<compile_context>
chip_gen: v5e
topology: v5e:2x2
jax: 0.10.0
libtpu: 0.0.40
codegen_flags: <defaults>
</compile_context>

<pallas_src>
import functools

import jax
import jax.numpy as jnp
from jax.experimental import pallas as pl
from jax.experimental.pallas import tpu as pltpu

_LANE = 128      # batch-tile granularity (batch lives on the lane axis)
_SUBLANE = 8     # f32 sublane granularity (output rows padded to this)


def _round_up(x, m):
    return ((x + m - 1) // m) * m


def _cdiv(a, b):
    return -(-a // b)


def _tdnn_kernel(n_hidden_layers, *refs):
    """Batch-on-lanes TDNN stack.

    refs = (xT_ref, [wT_i, bT_i] * n_hidden_layers, wT_out, bT_out, outT_ref)
      xT_ref   : (F, tile_b) bf16            (lanes = batch)
      wT_i     : (out_i, in_i) bf16          bT_i : (out_i, 1) f32
      wT_out   : (out_pad, hidden) bf16      bT_out: (out_pad, 1) f32
      outT_ref : (out_pad, tile_b) f32       (lanes = batch, lane-dense store)
    """
    x_ref = refs[0]
    out_ref = refs[-1]
    params = refs[1:-1]

    h = x_ref[...]                                   # bf16 (F, tb)
    idx = 0
    for _ in range(n_hidden_layers):
        w = params[idx][...]                         # bf16 (out, in)
        b = params[idx + 1][...]                     # f32  (out, 1)
        idx += 2
        pre = jnp.dot(w, h, preferred_element_type=jnp.float32) + b
        h = jnp.tanh(pre).astype(jnp.bfloat16)       # tanh in f32, MXU eats bf16
    w_out = params[idx][...]                         # bf16 (out_pad, hidden)
    b_out = params[idx + 1][...]                     # f32  (out_pad, 1)
    out_ref[...] = (
        jnp.dot(w_out, h, preferred_element_type=jnp.float32) + b_out
    ).astype(out_ref.dtype)


def _pick_batch_tile(B, tile_b_max):
    """Batch tile (multiple of 128).

    Large batches -> max tile (amortize ~0.35us/step pipeline overhead).
    Medium batches -> an even grid of ~4 steps (2 steps per v7x TensorCore,
    so each core still overlaps DMA with compute).
    Tiny batches -> a single step.
    """
    if B >= 4 * tile_b_max:
        return tile_b_max
    if B <= _LANE:
        return _LANE
    target_steps = 4 if B > 4 * _LANE else 2
    tb = _round_up(_cdiv(B, target_steps), _LANE)
    return max(_LANE, min(tb, tile_b_max))


def tdnn_forward(x, hidden_params, output_params, *, tile_b_max=8192):
    """x: (B, window+1) f32.  hidden_params: list of (W(in,out), b(1,out)).
    output_params: (W(in,out), b(1,out)).  Returns (B, output_size) f32."""
    B, F = x.shape
    n_hidden = len(hidden_params)
    w_out, b_out = output_params
    hidden_size = w_out.shape[0]
    out_size = w_out.shape[1]
    out_pad = _round_up(out_size, _SUBLANE)          # 4 -> 8 (2x), sublane axis only

    tb = _pick_batch_tile(B, tile_b_max)
    grid_steps = _cdiv(B, tb)
    B_pad = grid_steps * tb

    # Batch-on-lanes input: (F, B_pad) bf16, zero-padded batch columns.
    # (Wrapper-side transpose is layout plumbing so the kernel's x DMA and all
    #  intermediates/stores are lane-dense.)
    x_t = x.T.astype(jnp.bfloat16)
    if B_pad != B:
        x_t = jnp.pad(x_t, ((0, 0), (0, B_pad - B)))

    # Transposed weights: W^T (out, in) bf16; biases (out, 1) f32.
    flat_params = []
    for w, b in hidden_params:
        flat_params += [w.T.astype(jnp.bfloat16),
                        b.reshape(1, -1).T.astype(jnp.float32)]
    w_out_t = (jnp.zeros((out_pad, hidden_size), jnp.float32)
               .at[:out_size].set(w_out.T))
    b_out_t = (jnp.zeros((out_pad, 1), jnp.float32)
               .at[:out_size, 0].set(b_out.reshape(-1)))
    flat_params += [w_out_t.astype(jnp.bfloat16), b_out_t]

    grid = (grid_steps,)
    in_specs = [pl.BlockSpec((F, tb), lambda i: (0, i))]
    for p in flat_params:
        # Full-array, grid-invariant blocks (Pallas skips re-fetching blocks
        # whose index does not change between consecutive steps).
        in_specs.append(pl.BlockSpec(p.shape, lambda i: (0, 0)))
    out_specs = pl.BlockSpec((out_pad, tb), lambda i: (0, i))

    # Advisory cost hint for XLA scheduling around the custom call.
    layer_dims = [F] + [w.shape[1] for w, _ in hidden_params] + [out_pad]
    flops = 2 * B_pad * sum(a * b for a, b in zip(layer_dims[:-1], layer_dims[1:]))
    transcendentals = B_pad * sum(w.shape[1] for w, _ in hidden_params)
    param_bytes = sum(int(p.size) * p.dtype.itemsize for p in flat_params)
    bytes_accessed = int(x_t.size) * 2 + B_pad * out_pad * 4 + param_bytes

    # VMEM budget from actual tile sizes (double-buffered I/O blocks + params
    # + headroom for live f32/bf16 intermediates), clamped to v7x's 64 MiB.
    max_width = max([out_pad] + [w.shape[1] for w, _ in hidden_params])
    vmem_est = (
        2 * F * tb * 2                   # x block, double-buffered, bf16
        + 2 * out_pad * tb * 4           # output block, double-buffered, f32
        + 2 * param_bytes + (64 << 10)   # params + tile-padding slack
        + 4 * max_width * tb * 4         # live intermediates (headroom)
    )
    vmem_limit = int(min(64 << 20, max(8 << 20, 2 * vmem_est)))

    kernel = functools.partial(_tdnn_kernel, n_hidden)

    y_t = pl.pallas_call(
        kernel,
        out_shape=jax.ShapeDtypeStruct((out_pad, B_pad), jnp.float32),
        grid=grid,
        in_specs=in_specs,
        out_specs=out_specs,
        compiler_params=pltpu.CompilerParams(
            dimension_semantics=("parallel",),
            vmem_limit_bytes=vmem_limit,
        ),
        cost_estimate=pl.CostEstimate(
            flops=int(flops),
            transcendentals=int(transcendentals),
            bytes_accessed=int(bytes_accessed),
        ),
    )(x_t, *flat_params)

    # (out_pad, B_pad) -> (B, out_size): drop padding, back to natural layout.
    return y_t[:out_size, :B].T


def _init_linear(key, fan_in, fan_out):
    """Deterministic init mimicking PyTorch default: U(-1/sqrt(fan_in), +)."""
    kw, kb = jax.random.split(key)
    bound = 1.0 / jnp.sqrt(fan_in)
    # Stored pre-transposed: (in_features, out_features).
    w = jax.random.uniform(kw, (fan_in, fan_out), jnp.float32, -bound, bound)
    b = jax.random.uniform(kb, (1, fan_out), jnp.float32, -bound, bound)
    return w, b


def _reference_forward(x, hidden_params, output_params):
    h = x
    for w, b in hidden_params:
        h = jnp.tanh(h @ w + b)
    w_out, b_out = output_params
    return h @ w_out + b_out


if __name__ == "__main__":
    # Module config: TDNN(window=7, hidden_size=32, output_size=4, n_layers=2)
    window = 7
    in_features = window + 1       # 8
    hidden_size = 32
    output_size = 4
    n_layers = 2
    batch = 16

    key = jax.random.PRNGKey(0)
    k_x, k_l0, k_l1, k_out = jax.random.split(key, 4)

    x = jax.random.normal(k_x, (batch, in_features), jnp.float32)

    hidden_params = [_init_linear(k_l0, in_features, hidden_size)]
    for k in ([k_l1] if n_layers > 1 else []):
        hidden_params.append(_init_linear(k, hidden_size, hidden_size))
    output_params = _init_linear(k_out, hidden_size, output_size)

    y = tdnn_forward(x, hidden_params, output_params)
    y = jax.block_until_ready(y)

    y_ref = _reference_forward(x, hidden_params, output_params)
    assert y.shape == (batch, output_size)
    # bf16 inputs/weights (f32 accumulation) => loosened tolerance vs f32 ref.
    assert jnp.allclose(y, y_ref, atol=5e-2, rtol=5e-2), "mismatch vs reference"

    print("KERNEL_OK")
</pallas_src>

<mosaic_0001>
module attributes {stable_mosaic.version = 11 : i64} {
  func.func @_tdnn_kernel(%arg0: i32, %arg1: memref<8x128xbf16, #tpu.memory_space<vmem>>, %arg2: memref<32x8xbf16, #tpu.memory_space<vmem>>, %arg3: memref<32x1xf32, #tpu.memory_space<vmem>>, %arg4: memref<32x32xbf16, #tpu.memory_space<vmem>>, %arg5: memref<32x1xf32, #tpu.memory_space<vmem>>, %arg6: memref<8x32xbf16, #tpu.memory_space<vmem>>, %arg7: memref<8x1xf32, #tpu.memory_space<vmem>>, %arg8: memref<8x128xf32, #tpu.memory_space<vmem>>) attributes {dimension_semantics = [#tpu.dimension_semantics<parallel>], iteration_bounds = array<i64: 1>, scalar_prefetch = 0 : i64, scratch_operands = 0 : i64, tpu.core_type = #tpu.core_type<tc>, window_params = [{transform_indices = @transform_0, window_bounds = array<i64: 8, 128>}, {pipeline_mode = #tpu.pipeline_mode<synchronous>, transform_indices = @transform_1, window_bounds = array<i64: 32, 8>}, {pipeline_mode = #tpu.pipeline_mode<synchronous>, transform_indices = @transform_2, window_bounds = array<i64: 32, 1>}, {pipeline_mode = #tpu.pipeline_mode<synchronous>, transform_indices = @transform_3, window_bounds = array<i64: 32, 32>}, {pipeline_mode = #tpu.pipeline_mode<synchronous>, transform_indices = @transform_4, window_bounds = array<i64: 32, 1>}, {pipeline_mode = #tpu.pipeline_mode<synchronous>, transform_indices = @transform_5, window_bounds = array<i64: 8, 32>}, {pipeline_mode = #tpu.pipeline_mode<synchronous>, transform_indices = @transform_6, window_bounds = array<i64: 8, 1>}, {transform_indices = @transform_7, window_bounds = array<i64: 8, 128>}]} {
    %c0 = arith.constant 0 : index
    %c0_0 = arith.constant 0 : index
    %0 = vector.load %arg1[%c0, %c0_0] : memref<8x128xbf16, #tpu.memory_space<vmem>>, vector<8x128xbf16>
    %c0_1 = arith.constant 0 : index
    %c0_2 = arith.constant 0 : index
    %1 = vector.load %arg2[%c0_1, %c0_2] : memref<32x8xbf16, #tpu.memory_space<vmem>>, vector<32x8xbf16>
    %c0_3 = arith.constant 0 : index
    %c0_4 = arith.constant 0 : index
    %2 = vector.load %arg3[%c0_3, %c0_4] : memref<32x1xf32, #tpu.memory_space<vmem>>, vector<32x1xf32>
    %cst = arith.constant dense<0.000000e+00> : vector<32x128xf32>
    %3 = tpu.matmul %1, %0, %cst {dimension_numbers = #tpu.dot_dimension_numbers<[1], [0], [0], [1], [0, 0, 1, 1], [], []>} : vector<32x8xbf16>, vector<8x128xbf16>, vector<32x128xf32> -> vector<32x128xf32>
    %4 = vector.broadcast %2 : vector<32x1xf32> to vector<32x128xf32>
    %5 = arith.addf %3, %4 : vector<32x128xf32>
    %6 = math.tanh %5 : vector<32x128xf32>
    %7 = arith.truncf %6 : vector<32x128xf32> to vector<32x128xbf16>
    %c0_5 = arith.constant 0 : index
    %c0_6 = arith.constant 0 : index
    %8 = vector.load %arg4[%c0_5, %c0_6] : memref<32x32xbf16, #tpu.memory_space<vmem>>, vector<32x32xbf16>
    %c0_7 = arith.constant 0 : index
    %c0_8 = arith.constant 0 : index
    %9 = vector.load %arg5[%c0_7, %c0_8] : memref<32x1xf32, #tpu.memory_space<vmem>>, vector<32x1xf32>
    %cst_9 = arith.constant dense<0.000000e+00> : vector<32x128xf32>
    %10 = tpu.matmul %8, %7, %cst_9 {dimension_numbers = #tpu.dot_dimension_numbers<[1], [0], [0], [1], [0, 0, 1, 1], [], []>} : vector<32x32xbf16>, vector<32x128xbf16>, vector<32x128xf32> -> vector<32x128xf32>
    %11 = vector.broadcast %9 : vector<32x1xf32> to vector<32x128xf32>
    %12 = arith.addf %10, %11 : vector<32x128xf32>
    %13 = math.tanh %12 : vector<32x128xf32>
    %14 = arith.truncf %13 : vector<32x128xf32> to vector<32x128xbf16>
    %c0_10 = arith.constant 0 : index
    %c0_11 = arith.constant 0 : index
    %15 = vector.load %arg6[%c0_10, %c0_11] : memref<8x32xbf16, #tpu.memory_space<vmem>>, vector<8x32xbf16>
    %c0_12 = arith.constant 0 : index
    %c0_13 = arith.constant 0 : index
    %16 = vector.load %arg7[%c0_12, %c0_13] : memref<8x1xf32, #tpu.memory_space<vmem>>, vector<8x1xf32>
    %cst_14 = arith.constant dense<0.000000e+00> : vector<8x128xf32>
    %17 = tpu.matmul %15, %14, %cst_14 {dimension_numbers = #tpu.dot_dimension_numbers<[1], [0], [0], [1], [0, 0, 1, 1], [], []>} : vector<8x32xbf16>, vector<32x128xbf16>, vector<8x128xf32> -> vector<8x128xf32>
    %18 = vector.broadcast %16 : vector<8x1xf32> to vector<8x128xf32>
    %19 = arith.addf %17, %18 : vector<8x128xf32>
    %c0_15 = arith.constant 0 : index
    %c0_16 = arith.constant 0 : index
    %20 = vector.load %arg8[%c0_15, %c0_16] : memref<8x128xf32, #tpu.memory_space<vmem>>, vector<8x128xf32>
    tpu.vector_store %arg8[%c0_15, %c0_16], %19 {strides = array<i32>} : memref<8x128xf32, #tpu.memory_space<vmem>>, vector<8x128xf32>,
    return
  }
  func.func @transform_0(%arg0: i32) -> (i32, i32) {
    %c0_i32 = arith.constant 0 : i32
    %c0_i32_0 = arith.constant 0 : i32
    return %c0_i32, %arg0 : i32, i32
  }
  func.func @transform_1(%arg0: i32) -> (i32, i32) {
    %c0_i32 = arith.constant 0 : i32
    %c0_i32_0 = arith.constant 0 : i32
    %c0_i32_1 = arith.constant 0 : i32
    return %c0_i32, %c0_i32_0 : i32, i32
  }
  func.func @transform_2(%arg0: i32) -> (i32, i32) {
    %c0_i32 = arith.constant 0 : i32
    %c0_i32_0 = arith.constant 0 : i32
    %c0_i32_1 = arith.constant 0 : i32
    return %c0_i32, %c0_i32_0 : i32, i32
  }
  func.func @transform_3(%arg0: i32) -> (i32, i32) {
    %c0_i32 = arith.constant 0 : i32
    %c0_i32_0 = arith.constant 0 : i32
    %c0_i32_1 = arith.constant 0 : i32
    return %c0_i32, %c0_i32_0 : i32, i32
  }
  func.func @transform_4(%arg0: i32) -> (i32, i32) {
    %c0_i32 = arith.constant 0 : i32
    %c0_i32_0 = arith.constant 0 : i32
    %c0_i32_1 = arith.constant 0 : i32
    return %c0_i32, %c0_i32_0 : i32, i32
  }
  func.func @transform_5(%arg0: i32) -> (i32, i32) {
    %c0_i32 = arith.constant 0 : i32
    %c0_i32_0 = arith.constant 0 : i32
    %c0_i32_1 = arith.constant 0 : i32
    return %c0_i32, %c0_i32_0 : i32, i32
  }
  func.func @transform_6(%arg0: i32) -> (i32, i32) {
    %c0_i32 = arith.constant 0 : i32
    %c0_i32_0 = arith.constant 0 : i32
    %c0_i32_1 = arith.constant 0 : i32
    return %c0_i32, %c0_i32_0 : i32, i32
  }
  func.func @transform_7(%arg0: i32) -> (i32, i32) {
    %c0_i32 = arith.constant 0 : i32
    %c0_i32_0 = arith.constant 0 : i32
    return %c0_i32, %arg0 : i32, i32
  }
}

</mosaic_0001>

<llo_original>
// kernel: tpu_custom_call.1
$region0: #{tpu_custom_call.1}
  #allocation0 [shape = 'u32[]', space=smem, size = 0x4, offset = 0x4, fixed_abs, tag = 'smem constant byte address 0x4 - core index']
  #allocation1 [shape = 'u32[72,128]{1,0:T(1,128)}', space=vmem, size = 0x9000, scoped, tag = 'internal scratch']
  %s0 = inlined_call_operand.vmem [shape: bf16[8,128], index: 0, kind: input, shape index: {}]
  %s1 = inlined_call_operand.vmem [shape: bf16[32,8], index: 1, kind: input, shape index: {}]
  %s2 = inlined_call_operand.vmem [shape: f32[32,1], index: 2, kind: input, shape index: {}]
  %s3 = inlined_call_operand.vmem [shape: bf16[32,32], index: 3, kind: input, shape index: {}]
  %s4 = inlined_call_operand.vmem [shape: f32[32,1], index: 4, kind: input, shape index: {}]
  %s5 = inlined_call_operand.vmem [shape: bf16[8,32], index: 5, kind: input, shape index: {}]
  %s6 = inlined_call_operand.vmem [shape: f32[8,1], index: 6, kind: input, shape index: {}]
  %s7 = inlined_call_operand.hbm [shape: f32[8,128], index: 7, kind: output, shape index: {}]
  %s8 = sld [smem:[#allocation0]]
  $region38: #{tpu_custom_call.1} parent=0
    _
  %s10 = ssub.s32 1, %s8
  %s11 = scalar_select 0, %s10, %s8
  $region1: #{tpu_custom_call.1} parent=0
    #allocation2 [shape = 'u8[4096]{0}', space=vmem, size = 0x1000, scoped, tag = 'output window, operand 0, single buffered']
    #allocation3 [shape = 's32[1]{0}', space=sflag, size = 0x4, scoped, tag = 'scoped memory for tpu_custom_call.1']
    %12 = vsyncpa [#allocation3], 0
    // Predicated region
    $region2: #{tpu_custom_call.1} parent=1 // pred_check
      _
    $region3: #{tpu_custom_call.1} parent=1 // pred_check_branch
      %14 = sbr.rel (0) target = $region5
    $region4: #{tpu_custom_call.1} parent=1 // pred_region
      _
    $region5: #{tpu_custom_call.1} parent=1 // pred_fallthru
      _
    // Predicated region
    $region6: #{tpu_custom_call.1} parent=1 // pred_check
      _
    $region7: #{tpu_custom_call.1} parent=1 // pred_check_branch
      %16 = sbr.rel (0) target = $region9
    $region8: #{tpu_custom_call.1} parent=1 // pred_region
      _
    $region9: #{tpu_custom_call.1} parent=1 // pred_fallthru
      _
    // Predicated region
    $region10: #{tpu_custom_call.1} parent=1 // pred_check
      _
    $region11: #{tpu_custom_call.1} parent=1 // pred_check_branch
      %18 = sbr.rel (0) target = $region13
    $region12: #{tpu_custom_call.1} parent=1 // pred_region
      _
    $region13: #{tpu_custom_call.1} parent=1 // pred_fallthru
      _
    // Predicated region
    $region14: #{tpu_custom_call.1} parent=1 // pred_check
      _
    $region15: #{tpu_custom_call.1} parent=1 // pred_check_branch
      %20 = sbr.rel (0) target = $region17
    $region16: #{tpu_custom_call.1} parent=1 // pred_region
      _
    $region17: #{tpu_custom_call.1} parent=1 // pred_fallthru
      _
    // Predicated region
    $region18: #{tpu_custom_call.1} parent=1 // pred_check
      _
    $region19: #{tpu_custom_call.1} parent=1 // pred_check_branch
      %22 = sbr.rel (0) target = $region21
    $region20: #{tpu_custom_call.1} parent=1 // pred_region
      _
    $region21: #{tpu_custom_call.1} parent=1 // pred_fallthru
      _
    // Predicated region
    $region22: #{tpu_custom_call.1} parent=1 // pred_check
      _
    $region23: #{tpu_custom_call.1} parent=1 // pred_check_branch
      %24 = sbr.rel (0) target = $region25
    $region24: #{tpu_custom_call.1} parent=1 // pred_region
      _
    $region25: #{tpu_custom_call.1} parent=1 // pred_fallthru
      _
    // Predicated region
    $region26: #{tpu_custom_call.1} parent=1 // pred_check
      _
    $region27: #{tpu_custom_call.1} parent=1 // pred_check_branch
      %26 = sbr.rel (0) target = $region29
    $region28: #{tpu_custom_call.1} parent=1 // pred_region
      _
    $region29: #{tpu_custom_call.1} parent=1 // pred_fallthru
      _
    %v28 = vld [vmem:[%s0] sm:$0xf]
    %v29 = vld [vmem:[%s1] sm:$0xf]
    %v30 = vld [vmem:[%s1 + $0x4] sm:$0xf]
    %v31 = vld [vmem:[%s1 + $0x8] sm:$0xf]
    %v32 = vld [vmem:[%s1 + $0xc] sm:$0xf]
    %v33 = vld [vmem:[%s2] sm:$0xff]
    %v34 = vld [vmem:[%s2 + $0x8] sm:$0xff]
    %v35 = vld [vmem:[%s2 + $0x10] sm:$0xff]
    %v36 = vld [vmem:[%s2 + $0x18] sm:$0xff]
    %38 = vset.pattern.permute.xlu0 0
    %39 = vperm.xlu0 %38, %v33
    %v40 = vpop.permute.xlu0 %39
    %43 = vset.pattern.permute.xlu0 0
    %44 = vperm.xlu0 %43, %v34
    %v45 = vpop.permute.xlu0 %44
    %48 = vset.pattern.permute.xlu0 0
    %49 = vperm.xlu0 %48, %v35
    %v50 = vpop.permute.xlu0 %49
    %53 = vset.pattern.permute.xlu0 0
    %54 = vperm.xlu0 %53, %v36
    %v55 = vpop.permute.xlu0 %54
    %v61 = vunpack.c.l.b16 %v29
    %v62 = vunpack.c.l.b16 %v30
    %v63 = vunpack.c.l.b16 %v31
    %v64 = vunpack.c.l.b16 %v32
    %v65 = vpack.c.b16 %v62, %v61
    %v66 = vpack.c.b16 %v64, %v63
    %vm67 = vcmask 64512
    %v69 = vsel %vm67, %v65, 0
    %v72 = vsel %vm67, %v66, 0
    %vm74 = vcmask 1043456
    %v76 = vsel %vm74, %v28, 0
    %78 = vmatpush.bf16.msra.mxu0 0
    %79 = vmatpush.bf16.msra.mxu0 0
    %80 = vmatpush.bf16.msra.mxu0 0
    %81 = vmatpush.bf16.msra.mxu0 0
    %82 = vmatpush.bf16.msra.mxu0 0
    %83 = vmatpush.bf16.msra.mxu0 0
    %84 = vmatpush.bf16.msra.mxu0 0
    %85 = vmatpush.bf16.msra.mxu0 %v76
    %86 = vmatmul.bf16.gmra.mxu0 %v69
    %v87 = vpop.f32.mrf.mxu0
    %v88 = vadd.f32 %v40, %v87
    %v89 = vpop.f32.mrf.mxu0
    %v90 = vadd.f32 %v45, %v89
    %91 = vmatmul.bf16.gmra.mxu0 %v72
    %v92 = vpop.f32.mrf.mxu0
    %v93 = vadd.f32 %v50, %v92
    %v94 = vpop.f32.mrf.mxu0
    %v95 = vadd.f32 %v55, %v94
    %96 = vdwg.mxu0
    %v97 = vtanh.pop %v88
    %v98 = vtanh.pop %v90
    %v99 = vtanh.pop %v93
    %v100 = vtanh.pop %v95
    %v101 = vpack.c.bf16 %v98, %v97
    %v102 = vpack.c.bf16 %v100, %v99
    %v103 = vld [vmem:[%s3] sm:$0xf]
    %v104 = vld [vmem:[%s3 + $0x4] sm:$0xf]
    %v105 = vld [vmem:[%s3 + $0x8] sm:$0xf]
    %v106 = vld [vmem:[%s3 + $0xc] sm:$0xf]
    %v107 = vld [vmem:[%s4] sm:$0xff]
    %v108 = vld [vmem:[%s4 + $0x8] sm:$0xff]
    %v109 = vld [vmem:[%s4 + $0x10] sm:$0xff]
    %v110 = vld [vmem:[%s4 + $0x18] sm:$0xff]
    %112 = vset.pattern.permute.xlu0 0
    %113 = vperm.xlu0 %112, %v107
    %v114 = vpop.permute.xlu0 %113
    %117 = vset.pattern.permute.xlu0 0
    %118 = vperm.xlu0 %117, %v108
    %v119 = vpop.permute.xlu0 %118
    %122 = vset.pattern.permute.xlu0 0
    %123 = vperm.xlu0 %122, %v109
    %v124 = vpop.permute.xlu0 %123
    %127 = vset.pattern.permute.xlu0 0
    %128 = vperm.xlu0 %127, %v110
    %v129 = vpop.permute.xlu0 %128
    %v135 = vunpack.c.l.b16 %v103
    %v136 = vunpack.c.l.b16 %v104
    %v137 = vunpack.c.l.b16 %v105
    %v138 = vunpack.c.l.b16 %v106
    %v139 = vpack.c.b16 %v136, %v135
    %v140 = vpack.c.b16 %v138, %v137
    %vm141 = vcmask 261120
    %v143 = vsel %vm141, %v139, 0
    %v146 = vsel %vm141, %v140, 0
    %148 = vmatpush.bf16.msra.mxu0 0
    %149 = vmatpush.bf16.msra.mxu0 0
    %150 = vmatpush.bf16.msra.mxu0 0
    %151 = vmatpush.bf16.msra.mxu0 0
    %152 = vmatpush.bf16.msra.mxu0 0
    %153 = vmatpush.bf16.msra.mxu0 0
    %154 = vmatpush.bf16.msra.mxu0 %v102
    %155 = vmatpush.bf16.msra.mxu0 %v101
    %156 = vmatmul.bf16.gmra.mxu0 %v143
    %v157 = vpop.f32.mrf.mxu0
    %v158 = vadd.f32 %v114, %v157
    %v159 = vpop.f32.mrf.mxu0
    %v160 = vadd.f32 %v119, %v159
    %161 = vmatmul.bf16.gmra.mxu0 %v146
    %v162 = vpop.f32.mrf.mxu0
    %v163 = vadd.f32 %v124, %v162
    %v164 = vpop.f32.mrf.mxu0
    %v165 = vadd.f32 %v129, %v164
    %166 = vdwg.mxu0
    %v167 = vtanh.pop %v158
    %v168 = vtanh.pop %v160
    %v169 = vtanh.pop %v163
    %v170 = vtanh.pop %v165
    %v171 = vpack.c.bf16 %v168, %v167
    %v172 = vpack.c.bf16 %v170, %v169
    %v173 = vld [vmem:[%s5] sm:$0xf]
    %v174 = vld [vmem:[%s6] sm:$0xff]
    %176 = vset.pattern.permute.xlu0 0
    %177 = vperm.xlu0 %176, %v174
    %v178 = vpop.permute.xlu0 %177
    %v181 = vsel %vm141, %v173, 0
    %183 = vmatpush.bf16.msra.mxu0 0
    %184 = vmatpush.bf16.msra.mxu0 0
    %185 = vmatpush.bf16.msra.mxu0 0
    %186 = vmatpush.bf16.msra.mxu0 0
    %187 = vmatpush.bf16.msra.mxu0 0
    %188 = vmatpush.bf16.msra.mxu0 0
    %189 = vmatpush.bf16.msra.mxu0 %v172
    %190 = vmatpush.bf16.msra.mxu0 %v171
    %191 = vmatmul.bf16.gmra.mxu0 %v181
    %v192 = vpop.f32.mrf.mxu0
    %v193 = vadd.f32 %v178, %v192
    %v194 = vpop.f32.mrf.mxu0
    %195 = vdwg.mxu0
    %196 = vst [vmem:[#allocation2] sm:$0xff] %v193
    // Predicated region
    $region30: #{tpu_custom_call.1} parent=1 // pred_check
      _
    $region31: #{tpu_custom_call.1} parent=1 // pred_check_branch
      %198 = sbr.rel (0) target = $region33
    $region32: #{tpu_custom_call.1} parent=1 // pred_region
      %200 = vsyncadd [#allocation3], 0
      %s202 = sshll.u32 [#allocation2], 4
      %s203 = int_to_ptr.vmem [resolvable:$true] %s202
      %s204 = sshll.u32 %s7, 4
      %s205 = int_to_ptr.hbm [resolvable:$true] %s204
      %207 = dma.vmem_to_hbm [thread:$0]  %s203, 128, %s205, [#allocation3]
    $region33: #{tpu_custom_call.1} parent=1 // pred_fallthru
      _
    // Predicated region
    $region34: #{tpu_custom_call.1} parent=1 // pred_check
      _
    $region35: #{tpu_custom_call.1} parent=1 // pred_check_branch
      %209 = sbr.rel (0) target = $region37
    $region36: #{tpu_custom_call.1} parent=1 // pred_region
      %211 = dma.done [#allocation3], 128
    $region37: #{tpu_custom_call.1} parent=1 // pred_fallthru
      _
    %212 = vsyncpa [#allocation3], 1

</llo_original>
